<compile_context>
chip_gen: v7x
topology: tpu7x:2x2x1
jax: 0.10.0
libtpu: 0.0.40
codegen_flags: <defaults>
</compile_context>

<pallas_src>
import functools

import jax
import jax.numpy as jnp
from jax.experimental import pallas as pl
from jax.experimental.pallas import tpu as pltpu


def _roy_loss_kernel(o1_ref, o2_ref, y_ref, out_ref, *, use_sigmoid):
    s = pl.program_id(1)

    @pl.when(s == 0)
    def _():
        out_ref[...] = jnp.zeros_like(out_ref)

    o1 = o1_ref[0].astype(jnp.float32)   # (C, TS)
    o2 = o2_ref[0].astype(jnp.float32)   # (C, TS)
    y = y_ref[0].astype(jnp.float32)     # (C, TS)

    # --- MSEConsistancyLoss: (o1 - o2)^2 (per pixel, per class) ---
    cons = (o1 - o2) ** 2

    # --- FocalLoss with gamma=0: focal_weight == 1 -> plain -y * log(p) ---
    if use_sigmoid:
        # Numerically stable log-sigmoid without materializing a zeros tensor:
        # log_sigmoid(x) = min(x, 0) - log(1 + exp(-|x|))
        log_p = jnp.minimum(o1, 0.0) - jnp.log(1.0 + jnp.exp(-jnp.abs(o1)))
    else:
        m = jnp.max(o1, axis=0, keepdims=True)
        z = o1 - m
        log_p = z - jnp.log(jnp.sum(jnp.exp(z), axis=0, keepdims=True))
    pred = -(log_p * y)

    # TODO(synk): optional class_weights / frequency_weighting paths not wired in
    # (module defaults are None / False).
    # TODO(synk): if labels are known one-hot, an int-index y input + in-kernel
    # iota mask would shrink the y stream by C x (API kept dense per module spec).

    # Elementwise accumulation into the per-batch resident output block; the
    # cross-lane/sublane reduction is deferred to the wrapper.
    out_ref[...] += (cons + pred)[None]


def _choose_spatial_tile(S, C, lane_cap=8192):
    """Largest spatial tile (multiple of 128 dividing S) within a VMEM budget."""
    # Target <= ~1 MiB per f32 input block: 3 inputs x 2 pipeline buffers plus
    # the resident (C, TS) f32 output stay far below v5e's 16 MiB scoped VMEM
    # (and v7x's 32 MiB), so no vmem_limit_bytes override is needed.
    budget_lanes = max(128, ((1 << 20) // max(4 * C, 1)) // 128 * 128)
    cap = min(lane_cap, budget_lanes)
    if S <= cap:
        return S
    ts = (cap // 128) * 128
    while ts >= 128:
        if S % ts == 0:
            return ts
        ts -= 128
    # TODO(synk): pad ragged spatial sizes instead of falling back to a full-S block.
    return S


def roy_etal_loss(logit, y_true, *, sigmoid=False):
    """logit: (B, C, H, W, ...) NC...; y_true: (B//2, C, H, W, ...) matching output_1."""
    B, C = logit.shape[0], logit.shape[1]
    assert B % 2 == 0, "batch must split in half"
    Bh = B // 2
    S = 1
    for d in logit.shape[2:]:
        S *= d
    assert y_true.shape[0] == Bh and y_true.shape[1] == C

    # Free (contiguous) reshapes -- no HBM copies, no half-batch slices.
    logit_flat = logit.reshape(B, C, S)
    y_flat = y_true.reshape(Bh, C, S)

    TS = _choose_spatial_tile(S, C)
    n_s = S // TS

    use_sigmoid = bool(sigmoid) or (C == 1)
    kernel = functools.partial(_roy_loss_kernel, use_sigmoid=use_sigmoid)

    partial = pl.pallas_call(
        kernel,
        out_shape=jax.ShapeDtypeStruct((Bh, C, TS), jnp.float32),
        grid_spec=pltpu.PrefetchScalarGridSpec(
            num_scalar_prefetch=0,
            grid=(Bh, n_s),
            in_specs=[
                # o1: first half-batch rows of the same logit tensor.
                pl.BlockSpec((1, C, TS), lambda b, s: (b, 0, s)),
                # o2: second half-batch rows (offset by Bh blocks along batch).
                pl.BlockSpec((1, C, TS), lambda b, s: (b + Bh, 0, s)),
                # y: labels for the first half-batch.
                pl.BlockSpec((1, C, TS), lambda b, s: (b, 0, s)),
            ],
            # Per-batch resident accumulator block (constant across spatial axis).
            out_specs=pl.BlockSpec((1, C, TS), lambda b, s: (b, 0, 0)),
        ),
        compiler_params=pltpu.CompilerParams(
            dimension_semantics=("parallel", "arbitrary")),
    )(logit_flat, logit_flat, y_flat)

    # Final tiny reduction: mean over spatial, sum over class, mean over batch.
    return jnp.sum(partial) / (S * Bh)


def _reference(logit, y_true, *, sigmoid=False):
    """Pure-JAX replica of the PyTorch RoyEtalLoss forward (defaults)."""
    B, C = logit.shape[0], logit.shape[1]
    Bh = B // 2
    o1, o2 = logit[:Bh], logit[Bh:]
    o1f = o1.reshape(Bh, C, -1).astype(jnp.float32)
    o2f = o2.reshape(Bh, C, -1).astype(jnp.float32)
    cons = jnp.mean(jnp.sum(jnp.mean((o1f - o2f) ** 2, axis=-1), axis=1))
    if sigmoid or C == 1:
        log_p = jax.nn.log_sigmoid(o1.astype(jnp.float32))
    else:
        log_p = jax.nn.log_softmax(o1.astype(jnp.float32), axis=1)
    yf = y_true.reshape(Bh, C, -1).astype(jnp.float32)
    lpf = log_p.reshape(Bh, C, -1)
    pred = jnp.mean(jnp.sum(jnp.mean(-(lpf * yf), axis=-1), axis=1))
    return cons + pred


if __name__ == "__main__":
    key = jax.random.PRNGKey(0)
    k1, k2, k3, k4 = jax.random.split(key, 4)

    # --- multi-class (softmax) path, f32 ---
    B, C, H, W = 4, 4, 16, 16          # batch splits into 2 + 2
    logit = jax.random.normal(k1, (B, C, H, W), dtype=jnp.float32)
    cls = jax.random.randint(k2, (B // 2, H, W), 0, C)
    y_true = jax.nn.one_hot(cls, C, axis=1, dtype=jnp.float32)  # (B//2, C, H, W)

    loss = jax.block_until_ready(roy_etal_loss(logit, y_true))
    ref = jax.block_until_ready(_reference(logit, y_true))
    assert jnp.allclose(loss, ref, rtol=1e-5, atol=1e-5), (loss, ref)

    # --- same path with bf16 inputs (halved HBM read traffic) ---
    loss_bf16 = jax.block_until_ready(
        roy_etal_loss(logit.astype(jnp.bfloat16), y_true.astype(jnp.bfloat16)))
    ref_bf16 = jax.block_until_ready(
        _reference(logit.astype(jnp.bfloat16), y_true.astype(jnp.bfloat16)))
    assert jnp.allclose(loss_bf16, ref_bf16, rtol=1e-3, atol=1e-3), (loss_bf16, ref_bf16)

    # --- single-class (sigmoid) path ---
    logit1 = jax.random.normal(k3, (B, 1, H, W), dtype=jnp.float32)
    y1 = jax.random.uniform(k4, (B // 2, 1, H, W), dtype=jnp.float32)
    loss1 = jax.block_until_ready(roy_etal_loss(logit1, y1))
    ref1 = jax.block_until_ready(_reference(logit1, y1))
    assert jnp.allclose(loss1, ref1, rtol=1e-5, atol=1e-5), (loss1, ref1)

    print("KERNEL_OK")
</pallas_src>

<mosaic_0001>
module attributes {stable_mosaic.version = 11 : i64} {
  func.func @_roy_loss_kernel(%arg0: i32, %arg1: i32, %arg2: memref<1x4x256xf32, #tpu.memory_space<vmem>>, %arg3: memref<1x4x256xf32, #tpu.memory_space<vmem>>, %arg4: memref<1x4x256xf32, #tpu.memory_space<vmem>>, %arg5: memref<1x4x256xf32, #tpu.memory_space<vmem>>) attributes {dimension_semantics = [#tpu.dimension_semantics<parallel>, #tpu.dimension_semantics<arbitrary>], iteration_bounds = array<i64: 2, 1>, scalar_prefetch = 0 : i64, scratch_operands = 0 : i64, tpu.core_type = #tpu.core_type<tc>, window_params = [{transform_indices = @transform_0, window_bounds = array<i64: 1, 4, 256>}, {transform_indices = @transform_1, window_bounds = array<i64: 1, 4, 256>}, {transform_indices = @transform_2, window_bounds = array<i64: 1, 4, 256>}, {transform_indices = @transform_3, window_bounds = array<i64: 1, 4, 256>}]} {
    %c0_i32 = arith.constant 0 : i32
    %0 = arith.cmpi eq, %arg1, %c0_i32 : i32
    %1 = arith.extui %0 : i1 to i32
    %c0_i32_0 = arith.constant 0 : i32
    %2 = arith.cmpi ne, %1, %c0_i32_0 : i32
    scf.if %2 {
      %cst_17 = arith.constant 0.000000e+00 : f32
      %29 = vector.broadcast %cst_17 : f32 to vector<1x4x256xf32>
      %c0_18 = arith.constant 0 : index
      %c0_19 = arith.constant 0 : index
      %c0_20 = arith.constant 0 : index
      %30 = vector.load %arg5[%c0_18, %c0_19, %c0_20] : memref<1x4x256xf32, #tpu.memory_space<vmem>>, vector<1x4x256xf32>
      tpu.vector_store %arg5[%c0_18, %c0_19, %c0_20], %29 {strides = array<i32>} : memref<1x4x256xf32, #tpu.memory_space<vmem>>, vector<1x4x256xf32>,
    } else {
    }
    %c0 = arith.constant 0 : index
    %c0_1 = arith.constant 0 : index
    %c0_2 = arith.constant 0 : index
    %3 = vector.load %arg2[%c0, %c0_1, %c0_2] : memref<1x4x256xf32, #tpu.memory_space<vmem>>, vector<1x4x256xf32>
    %4 = vector.shape_cast %3 : vector<1x4x256xf32> to vector<4x256xf32>
    %c0_3 = arith.constant 0 : index
    %c0_4 = arith.constant 0 : index
    %c0_5 = arith.constant 0 : index
    %5 = vector.load %arg3[%c0_3, %c0_4, %c0_5] : memref<1x4x256xf32, #tpu.memory_space<vmem>>, vector<1x4x256xf32>
    %6 = vector.shape_cast %5 : vector<1x4x256xf32> to vector<4x256xf32>
    %c0_6 = arith.constant 0 : index
    %c0_7 = arith.constant 0 : index
    %c0_8 = arith.constant 0 : index
    %7 = vector.load %arg4[%c0_6, %c0_7, %c0_8] : memref<1x4x256xf32, #tpu.memory_space<vmem>>, vector<1x4x256xf32>
    %8 = vector.shape_cast %7 : vector<1x4x256xf32> to vector<4x256xf32>
    %9 = arith.subf %4, %6 : vector<4x256xf32>
    %10 = arith.mulf %9, %9 : vector<4x256xf32>
    %cst = arith.constant dense<0xFF800000> : vector<256xf32>
    %11 = vector.multi_reduction <maximumf>, %4, %cst [0] : vector<4x256xf32> to vector<256xf32>
    %12 = vector.shape_cast %11 : vector<256xf32> to vector<1x256xf32>
    %13 = vector.broadcast %12 : vector<1x256xf32> to vector<4x256xf32>
    %14 = arith.subf %4, %13 : vector<4x256xf32>
    %15 = math.exp %14 : vector<4x256xf32>
    %cst_9 = arith.constant dense<0.000000e+00> : vector<256xf32>
    %16 = vector.multi_reduction <add>, %15, %cst_9 [0] : vector<4x256xf32> to vector<256xf32>
    %17 = vector.shape_cast %16 : vector<256xf32> to vector<1x256xf32>
    %18 = math.log %17 : vector<1x256xf32>
    %19 = vector.broadcast %18 : vector<1x256xf32> to vector<4x256xf32>
    %20 = arith.subf %14, %19 : vector<4x256xf32>
    %21 = arith.mulf %20, %8 : vector<4x256xf32>
    %cst_10 = arith.constant 0.000000e+00 : f32
    %22 = vector.broadcast %cst_10 : f32 to vector<4x256xf32>
    %23 = arith.subf %22, %21 : vector<4x256xf32>
    %c0_11 = arith.constant 0 : index
    %c0_12 = arith.constant 0 : index
    %c0_13 = arith.constant 0 : index
    %24 = vector.load %arg5[%c0_11, %c0_12, %c0_13] : memref<1x4x256xf32, #tpu.memory_space<vmem>>, vector<1x4x256xf32>
    %25 = arith.addf %10, %23 : vector<4x256xf32>
    %26 = vector.shape_cast %25 : vector<4x256xf32> to vector<1x4x256xf32>
    %27 = arith.addf %24, %26 : vector<1x4x256xf32>
    %c0_14 = arith.constant 0 : index
    %c0_15 = arith.constant 0 : index
    %c0_16 = arith.constant 0 : index
    %28 = vector.load %arg5[%c0_14, %c0_15, %c0_16] : memref<1x4x256xf32, #tpu.memory_space<vmem>>, vector<1x4x256xf32>
    tpu.vector_store %arg5[%c0_14, %c0_15, %c0_16], %27 {strides = array<i32>} : memref<1x4x256xf32, #tpu.memory_space<vmem>>, vector<1x4x256xf32>,
    return
  }
  func.func @transform_0(%arg0: i32, %arg1: i32) -> (i32, i32, i32) {
    %c0_i32 = arith.constant 0 : i32
    %c0_i32_0 = arith.constant 0 : i32
    return %arg0, %c0_i32, %arg1 : i32, i32, i32
  }
  func.func @transform_1(%arg0: i32, %arg1: i32) -> (i32, i32, i32) {
    %c2_i32 = arith.constant 2 : i32
    %0 = arith.addi %arg0, %c2_i32 : i32
    %c0_i32 = arith.constant 0 : i32
    %c0_i32_0 = arith.constant 0 : i32
    return %0, %c0_i32, %arg1 : i32, i32, i32
  }
  func.func @transform_2(%arg0: i32, %arg1: i32) -> (i32, i32, i32) {
    %c0_i32 = arith.constant 0 : i32
    %c0_i32_0 = arith.constant 0 : i32
    return %arg0, %c0_i32, %arg1 : i32, i32, i32
  }
  func.func @transform_3(%arg0: i32, %arg1: i32) -> (i32, i32, i32) {
    %c0_i32 = arith.constant 0 : i32
    %c0_i32_0 = arith.constant 0 : i32
    %c0_i32_1 = arith.constant 0 : i32
    return %arg0, %c0_i32, %c0_i32_0 : i32, i32, i32
  }
}

</mosaic_0001>

<llo_original>
// kernel: tpu_custom_call.1
$region0: #{tpu_custom_call.1}
  #allocation0 [shape = 'u32[]', space=smem, size = 0x4, offset = 0x4, fixed_abs, tag = 'smem constant byte address 0x4 - core index']
  #allocation1 [shape = 'u32[144,128]{1,0:T(1,128)}', space=vmem, size = 0x12000, scoped, tag = 'internal scratch']
  %s0 = inlined_call_operand.hbm [shape: f32[4,4,256], index: 0, kind: input, shape index: {}]
  %s1 = inlined_call_operand.hbm [shape: f32[4,4,256], index: 1, kind: input, shape index: {}]
  %s2 = inlined_call_operand.hbm [shape: f32[2,4,256], index: 2, kind: input, shape index: {}]
  %s3 = inlined_call_operand.hbm [shape: f32[2,4,256], index: 3, kind: output, shape index: {}]
  %s4 = sld [smem:[#allocation0]]
  $region61: #{tpu_custom_call.1} parent=0
    _
  %s6 = ssub.s32 1, %s4
  %s7 = scalar_select 0, %s6, %s4
  $region1: #{tpu_custom_call.1} parent=0
    #allocation2 [shape = 'u8[8192]{0}', space=vmem, size = 0x2000, scoped, tag = 'input window, operand 0']
    #allocation3 [shape = 's32[2]{0}', space=sflag, size = 0x8, scoped, tag = 'scoped memory for tpu_custom_call.1']
    #allocation4 [shape = 's32[2]{0}', space=sflag, size = 0x8, scoped, tag = 'scoped memory for tpu_custom_call.1']
    #allocation5 [shape = 'u8[8192]{0}', space=vmem, size = 0x2000, scoped, tag = 'input window, operand 1']
    #allocation6 [shape = 's32[2]{0}', space=sflag, size = 0x8, scoped, tag = 'scoped memory for tpu_custom_call.1']
    #allocation7 [shape = 'u8[8192]{0}', space=vmem, size = 0x2000, scoped, tag = 'input window, operand 2']
    #allocation8 [shape = 'u8[8192]{0}', space=vmem, size = 0x2000, scoped, tag = 'output window, operand 0']
    %8 = vsyncpa [#allocation3], 0
    %s9 = scalar_lea.sflag [#allocation3], 1
    %10 = vsyncpa %s9, 0
    %11 = vsyncpa [#allocation6], 0
    %s12 = scalar_lea.sflag [#allocation6], 1
    %13 = vsyncpa %s12, 0
    %14 = vsyncpa [#allocation4], 0
    %s15 = scalar_lea.sflag [#allocation4], 1
    %16 = vsyncpa %s15, 0
    loop: start=0, step=1, limit=4
    $region2: #{tpu_custom_call.1} parent=1 // loop_pre_header
      _
    $region3: #{tpu_custom_call.1} parent=1 // loop_header
      %s18 = sphi 0, %s22
      %p19 = scmp.ge.s32.totalorder %s18, 4
      %s25 = sphi 0, %s37
      %s26 = sphi 0, %s33
      %s27 = sphi 0, %s25
      %s28 = sphi 0, %s26
      %s29 = sphi 0, %s27
      %s30 = sphi 0, %s28
      %s42 = sphi 0, %s44
      %s45 = sphi 0, %s42
      %s46 = sphi 0, %s45
      %s62 = sphi 0, %s46
      %s72 = sphi 0, %s74
      %s75 = sphi 0, %s72
      %s76 = sphi 0, %s75
      %s92 = sphi 0, %s76
      %s100 = sphi 0, %s102
      %s103 = sphi 0, %s100
      %s104 = sphi 0, %s103
      %s120 = sphi 0, %s104
      %s126 = sphi 0, %s128
      %s129 = sphi 0, %s126
      %s130 = sphi 0, %s129
      %s146 = sphi 0, %s130
    $region4: #{tpu_custom_call.1} parent=1 // loop_header_branch
      %21 = sbr.rel (%p19) target = $region8
    $region5: #{tpu_custom_call.1} parent=1 // loop_body
      %s23 = ssub.s32 %s18, 1
      %s24 = ssub.s32 %s18, 2
      %s31 = sadd.s32 1, %s26
      %p32 = scmp.ge.s32.totalorder %s31, 1
      %s33 = scalar_select %p32, 0, %s31
      %s34 = sadd.s32 1, %s25
      %s35 = scalar_select %p32, %s34, %s25
      %p36 = scmp.ge.s32.totalorder %s35, 2
      %s37 = scalar_select %p36, 0, %s35
      %s38 = ssub.s32 %s25, %s37
      %s39 = ssub.s32 %s26, %s33
      %s40 = sor.u32 %s38, %s39
      %p41 = scmp.eq.s32.totalorder %s40, 0
      %s43 = sadd.s32 %s42, 1
      %s44 = scalar_select %p41, %s42, %s43
      %p47 = pneg %p41
      %p48 = scmp.eq.s32.totalorder %s18, 1
      %p49 = por %p47, %p48
      %p50 = scmp.ne.s32.totalorder %s42, %s45
      %p51 = scmp.eq.s32.totalorder %s18, 0
      %p52 = por %p50, %p51
      %p53 = scmp.ne.s32.totalorder %s42, %s45
      %p54 = scmp.eq.s32.totalorder %s23, 1
      %p55 = por %p53, %p54
      %p56 = scmp.ne.s32.totalorder %s45, %s46
      %p57 = scmp.eq.s32.totalorder %s23, 0
      %p58 = por %p56, %p57
      %p59 = scmp.ne.s32.totalorder %s45, %s46
      %p60 = scmp.eq.s32.totalorder %s24, 1
      %p61 = por %p59, %p60
      %p63 = scmp.ne.s32.totalorder %s46, %s62
      %p64 = scmp.eq.s32.totalorder %s24, 0
      %p65 = por %p63, %p64
      %s66 = sadd.s32 %s25, 2
      %s67 = sadd.s32 %s37, 2
      %s68 = ssub.s32 %s66, %s67
      %s69 = ssub.s32 %s26, %s33
      %s70 = sor.u32 %s68, %s69
      %p71 = scmp.eq.s32.totalorder %s70, 0
      %s73 = sadd.s32 %s72, 1
      %s74 = scalar_select %p71, %s72, %s73
      %p77 = pneg %p71
      %p78 = scmp.eq.s32.totalorder %s18, 1
      %p79 = por %p77, %p78
      %p80 = scmp.ne.s32.totalorder %s72, %s75
      %p81 = scmp.eq.s32.totalorder %s18, 0
      %p82 = por %p80, %p81
      %p83 = scmp.ne.s32.totalorder %s72, %s75
      %p84 = scmp.eq.s32.totalorder %s23, 1
      %p85 = por %p83, %p84
      %p86 = scmp.ne.s32.totalorder %s75, %s76
      %p87 = scmp.eq.s32.totalorder %s23, 0
      %p88 = por %p86, %p87
      %p89 = scmp.ne.s32.totalorder %s75, %s76
      %p90 = scmp.eq.s32.totalorder %s24, 1
      %p91 = por %p89, %p90
      %p93 = scmp.ne.s32.totalorder %s76, %s92
      %p94 = scmp.eq.s32.totalorder %s24, 0
      %p95 = por %p93, %p94
      %s96 = ssub.s32 %s25, %s37
      %s97 = ssub.s32 %s26, %s33
      %s98 = sor.u32 %s96, %s97
      %p99 = scmp.eq.s32.totalorder %s98, 0
      %s101 = sadd.s32 %s100, 1
      %s102 = scalar_select %p99, %s100, %s101
      %p105 = pneg %p99
      %p106 = scmp.eq.s32.totalorder %s18, 1
      %p107 = por %p105, %p106
      %p108 = scmp.ne.s32.totalorder %s100, %s103
      %p109 = scmp.eq.s32.totalorder %s18, 0
      %p110 = por %p108, %p109
      %p111 = scmp.ne.s32.totalorder %s100, %s103
      %p112 = scmp.eq.s32.totalorder %s23, 1
      %p113 = por %p111, %p112
      %p114 = scmp.ne.s32.totalorder %s103, %s104
      %p115 = scmp.eq.s32.totalorder %s23, 0
      %p116 = por %p114, %p115
      %p117 = scmp.ne.s32.totalorder %s103, %s104
      %p118 = scmp.eq.s32.totalorder %s24, 1
      %p119 = por %p117, %p118
      %p121 = scmp.ne.s32.totalorder %s104, %s120
      %p122 = scmp.eq.s32.totalorder %s24, 0
      %p123 = por %p121, %p122
      %s124 = ssub.s32 %s25, %s37
      %p125 = scmp.eq.s32.totalorder %s124, 0
      %s127 = sadd.s32 %s126, 1
      %s128 = scalar_select %p125, %s126, %s127
      %p131 = pneg %p125
      %p132 = scmp.eq.s32.totalorder %s18, 1
      %p133 = por %p131, %p132
      %p134 = scmp.ne.s32.totalorder %s126, %s129
      %p135 = scmp.eq.s32.totalorder %s18, 0
      %p136 = por %p134, %p135
      %p137 = scmp.ne.s32.totalorder %s126, %s129
      %p138 = scmp.eq.s32.totalorder %s23, 1
      %p139 = por %p137, %p138
      %p140 = scmp.ne.s32.totalorder %s129, %s130
      %p141 = scmp.eq.s32.totalorder %s23, 0
      %p142 = por %p140, %p141
      %p143 = scmp.ne.s32.totalorder %s129, %s130
      %p144 = scmp.eq.s32.totalorder %s24, 1
      %p145 = por %p143, %p144
      %p147 = scmp.ne.s32.totalorder %s130, %s146
      %p148 = scmp.eq.s32.totalorder %s24, 0
      %p149 = por %p147, %p148
      %p150 = scmp.le.s32.totalorder 1, %s18
      %p151 = scmp.lt.s32.totalorder %s18, 3
      %p152 = pnand %p150, %p151
      %p153 = pneg %p152
      // Predicated region
      $region9: #{tpu_custom_call.1} parent=5 // pred_check
        _
      $region10: #{tpu_custom_call.1} parent=5 // pred_check_branch
        %155 = sbr.rel (%p152) target = $region12
      $region11: #{tpu_custom_call.1} parent=5 // pred_region
        %s156 = ssub.s32 %s18, 1
      $region12: #{tpu_custom_call.1} parent=5 // pred_fallthru
        _
      %p157 = scmp.lt.s32.totalorder %s18, 2
      // Predicated region
      $region13: #{tpu_custom_call.1} parent=5 // pred_check
        %p158 = pneg %p157
      $region14: #{tpu_custom_call.1} parent=5 // pred_check_branch
        %160 = sbr.rel (%p158) target = $region16
      $region15: #{tpu_custom_call.1} parent=5 // pred_region
        // Predicated region
        $region17: #{tpu_custom_call.1} parent=15 // pred_check
          %p161 = pneg %p52
        $region18: #{tpu_custom_call.1} parent=15 // pred_check_branch
          %163 = sbr.rel (%p161) target = $region20
        $region19: #{tpu_custom_call.1} parent=15 // pred_region
          %s164 = sand.u32 %s42, 1
          %s165 = scalar_lea.sflag [#allocation3], %s164
          %s166 = sand.u32 %s42, 1
          %s167 = smul.addr %s166, 8
          %s168 = scalar_lea.vmem [#allocation2], %s167
          %s169 = smul.u32 2, %s26
          %s171 = ssub.s32 128, 128
          %172 = vsyncadd %s165, %s171
          %s173 = smul.addr %s25, 2
          %s174 = sadd.s32 %s169, %s173
          %s175 = smul.addr %s174, 64
          %s176 = scalar_lea.hbm %s0, %s175
          %s178 = sshll.u32 %s168, 4
          %s179 = int_to_ptr.vmem [resolvable:$true] %s178
          %181 = dma.hbm_to_vmem [thread:$0]  %s176, 128, %s179, %s165
        $region20: #{tpu_custom_call.1} parent=15 // pred_fallthru
          _
        // Predicated region
        $region21: #{tpu_custom_call.1} parent=15 // pred_check
          %p182 = pneg %p82
        $region22: #{tpu_custom_call.1} parent=15 // pred_check_branch
          %184 = sbr.rel (%p182) target = $region24
        $region23: #{tpu_custom_call.1} parent=15 // pred_region
          %s185 = sand.u32 %s18, 1
          %s186 = scalar_lea.sflag [#allocation6], %s185
          %s187 = sand.u32 %s72, 1
          %s188 = smul.addr %s187, 8
          %s189 = scalar_lea.vmem [#allocation5], %s188
          %s190 = sadd.s32 %s25, 2
          %s191 = smul.u32 2, %s26
          %s193 = ssub.s32 128, 128
          %194 = vsyncadd %s186, %s193
          %s195 = smul.addr %s190, 2
          %s196 = sadd.s32 %s191, %s195
          %s197 = smul.addr %s196, 64
          %s198 = scalar_lea.hbm %s1, %s197
          %s200 = sshll.u32 %s189, 4
          %s201 = int_to_ptr.vmem [resolvable:$true] %s200
          %203 = dma.hbm_to_vmem [thread:$0]  %s198, 128, %s201, %s186
        $region24: #{tpu_custom_call.1} parent=15 // pred_fallthru
          _
        // Predicated region
        $region25: #{tpu_custom_call.1} parent=15 // pred_check
          %p204 = pneg %p110
        $region26: #{tpu_custom_call.1} parent=15 // pred_check_branch
          %206 = sbr.rel (%p204) target = $region28
        $region27: #{tpu_custom_call.1} parent=15 // pred_region
          %s207 = sand.u32 %s18, 1
          %s208 = scalar_lea.sflag [#allocation6], %s207
          %s209 = sand.u32 %s100, 1
          %s210 = smul.addr %s209, 8
          %s211 = scalar_lea.vmem [#allocation7], %s210
          %s212 = smul.u32 2, %s26
          %s214 = ssub.s32 128, 128
          %215 = vsyncadd %s208, %s214
          %s216 = smul.addr %s25, 2
          %s217 = sadd.s32 %s212, %s216
          %s218 = smul.addr %s217, 64
          %s219 = scalar_lea.hbm %s2, %s218
          %s221 = sshll.u32 %s211, 4
          %s222 = int_to_ptr.vmem [resolvable:$true] %s221
          %224 = dma.hbm_to_vmem [thread:$0]  %s219, 128, %s222, %s208
        $region28: #{tpu_custom_call.1} parent=15 // pred_fallthru
          _
      $region16: #{tpu_custom_call.1} parent=5 // pred_fallthru
        _
      %p225 = scmp.le.s32.totalorder 1, %s18
      %p226 = scmp.lt.s32.totalorder %s18, 3
      %p227 = pnand %p225, %p226
      %p228 = pneg %p227
      // Predicated region
      $region29: #{tpu_custom_call.1} parent=5 // pred_check
        _
      $region30: #{tpu_custom_call.1} parent=5 // pred_check_branch
        %230 = sbr.rel (%p227) target = $region32
      $region31: #{tpu_custom_call.1} parent=5 // pred_region
        %s231 = ssub.s32 %s18, 1
        %s232 = sand.u32 %s45, 1
        %s233 = scalar_lea.sflag [#allocation3], %s232
        %s234 = sand.u32 %s45, 1
        %s235 = smul.addr %s234, 8
        %s236 = scalar_lea.vmem [#allocation2], %s235
        // Predicated region
        $region33: #{tpu_custom_call.1} parent=31 // pred_check
          %p237 = pneg %p58
        $region34: #{tpu_custom_call.1} parent=31 // pred_check_branch
          %239 = sbr.rel (%p237) target = $region36
        $region35: #{tpu_custom_call.1} parent=31 // pred_region
          %240 = dma.done %s233, 128
        $region36: #{tpu_custom_call.1} parent=31 // pred_fallthru
          _
        %s241 = sand.u32 %s23, 1
        %s242 = scalar_lea.sflag [#allocation6], %s241
        %s243 = sand.u32 %s75, 1
        %s244 = smul.addr %s243, 8
        %s245 = scalar_lea.vmem [#allocation5], %s244
        // Predicated region
        $region37: #{tpu_custom_call.1} parent=31 // pred_check
          %p246 = pneg %p88
        $region38: #{tpu_custom_call.1} parent=31 // pred_check_branch
          %248 = sbr.rel (%p246) target = $region40
        $region39: #{tpu_custom_call.1} parent=31 // pred_region
          %249 = dma.done %s242, 128
        $region40: #{tpu_custom_call.1} parent=31 // pred_fallthru
          _
        %s250 = sand.u32 %s23, 1
        %s251 = scalar_lea.sflag [#allocation6], %s250
        %s252 = sand.u32 %s103, 1
        %s253 = smul.addr %s252, 8
        %s254 = scalar_lea.vmem [#allocation7], %s253
        // Predicated region
        $region41: #{tpu_custom_call.1} parent=31 // pred_check
          %p255 = pneg %p116
        $region42: #{tpu_custom_call.1} parent=31 // pred_check_branch
          %257 = sbr.rel (%p255) target = $region44
        $region43: #{tpu_custom_call.1} parent=31 // pred_region
          %258 = dma.done %s251, 128
        $region44: #{tpu_custom_call.1} parent=31 // pred_fallthru
          _
        %s259 = sand.u32 %s45, 1
        %s260 = scalar_lea.sflag [#allocation3], %s259
        %s261 = sand.u32 %s45, 1
        %s262 = smul.addr %s261, 8
        %s263 = scalar_lea.vmem [#allocation2], %s262
        %p264 = pneg %p58
        %p265 = pneg %p55
        %s266 = sand.u32 %s23, 1
        %s267 = scalar_lea.sflag [#allocation6], %s266
        %s268 = sand.u32 %s75, 1
        %s269 = smul.addr %s268, 8
        %s270 = scalar_lea.vmem [#allocation5], %s269
        %p271 = pneg %p88
        %p272 = pneg %p85
        %s273 = sand.u32 %s23, 1
        %s274 = scalar_lea.sflag [#allocation6], %s273
        %s275 = sand.u32 %s103, 1
        %s276 = smul.addr %s275, 8
        %s277 = scalar_lea.vmem [#allocation7], %s276
        %p278 = pneg %p116
        %p279 = pneg %p113
        %p280 = pneg %p142
        %p281 = pneg %p139
        %s282 = sand.u32 %s129, 1
        %s283 = scalar_lea.sflag [#allocation4], %s282
        %s284 = sand.u32 %s129, 1
        %s285 = smul.addr %s284, 8
        %s286 = scalar_lea.vmem [#allocation8], %s285
        %s287 = smul.u32 2, %s28
        %s288 = sadd.s32 %s27, 2
        %s289 = smul.u32 2, %s28
        %s290 = smul.u32 2, %s28
        %p291 = scmp.eq.s32.totalorder %s28, 0
        // Predicated region
        $region45: #{tpu_custom_call.1} parent=31 // pred_check
          %p292 = pneg %p291
        $region46: #{tpu_custom_call.1} parent=31 // pred_check_branch
          %294 = sbr.rel (%p292) target = $region48
        $region47: #{tpu_custom_call.1} parent=31 // pred_region
          %295 = vst [vmem:[%s286] sm:$0xff] 0.0
        $region48: #{tpu_custom_call.1} parent=31 // pred_fallthru
          _
        %v296 = vld [vmem:[%s236] sm:$0xff]
        %v297 = vld [vmem:[%s245] sm:$0xff]
        %v298 = vld [vmem:[%s254] sm:$0xff]
        %v299 = vsub.f32 %v296, %v297
        %v300 = vmul.f32 %v299, %v299
        %v302 = vcombine.high %v296, %v296
        %vm304 = vcmask 1043456
        %v305 = vsel %vm304, %v296, -inf
        %v306 = vrot.slane %v305, 4
        %v307 = vmax.f32 %v305, %v306
        %v308 = vrot.slane %v307, 2
        %v309 = vmax.f32 %v307, %v308
        %v310 = vrot.slane %v309, 1
        %v311 = vmax.f32 %v309, %v310
        %v312 = vsel %vm304, %v302, -inf
        %v313 = vrot.slane %v312, 4
        %v314 = vmax.f32 %v312, %v313
        %v315 = vrot.slane %v314, 2
        %v316 = vmax.f32 %v314, %v315
        %v317 = vrot.slane %v316, 1
        %v318 = vmax.f32 %v316, %v317
        %v321 = vcombine.low %v311, %v318
        %v323 = vsub.f32 %v296, %v321
        %v324 = vmul.f32 %v323, 1.442695
        %v325 = vpow.pop %v324
        %v327 = vcombine.high %v325, %v325
        %v329 = vsel %vm304, %v325, 0.0
        %v330 = vrot.slane %v329, 4
        %v331 = vadd.f32 %v329, %v330
        %v332 = vrot.slane %v331, 2
        %v333 = vadd.f32 %v331, %v332
        %v334 = vrot.slane %v333, 1
        %v335 = vadd.f32 %v333, %v334
        %v336 = vsel %vm304, %v327, 0.0
        %v337 = vrot.slane %v336, 4
        %v338 = vadd.f32 %v336, %v337
        %v339 = vrot.slane %v338, 2
        %v340 = vadd.f32 %v338, %v339
        %v341 = vrot.slane %v340, 1
        %v342 = vadd.f32 %v340, %v341
        %v343 = vlog2.pop %v335
        %v344 = vmul.f32 %v343, 0.6931472
        %v345 = vlog2.pop %v342
        %v346 = vmul.f32 %v345, 0.6931472
        %v349 = vcombine.low %v344, %v346
        %v351 = vsub.f32 %v323, %v349
        %v352 = vmul.f32 %v351, %v298
        %v353 = vsub.f32 0.0, %v352
        %v354 = vld [vmem:[%s286] sm:$0xff]
        %v355 = vadd.f32 %v300, %v353
        %v356 = vadd.f32 %v354, %v355
        %357 = vst [vmem:[%s286] sm:$0xff] %v356
        %s358 = sand.u32 %s129, 1
        %s359 = scalar_lea.sflag [#allocation4], %s358
        %s360 = sand.u32 %s129, 1
        %s361 = smul.addr %s360, 8
        %s362 = scalar_lea.vmem [#allocation8], %s361
        // Predicated region
        $region49: #{tpu_custom_call.1} parent=31 // pred_check
          %p363 = pneg %p139
        $region50: #{tpu_custom_call.1} parent=31 // pred_check_branch
          %365 = sbr.rel (%p363) target = $region52
        $region51: #{tpu_custom_call.1} parent=31 // pred_region
          %s367 = ssub.s32 128, 128
          %368 = vsyncadd %s359, %s367
          %s369 = smul.addr %s27, 2
          %s370 = smul.addr %s369, 64
          %s371 = scalar_lea.hbm %s3, %s370
          %s373 = sshll.u32 %s362, 4
          %s374 = int_to_ptr.vmem [resolvable:$true] %s373
          %376 = dma.vmem_to_hbm [thread:$0]  %s374, 128, %s371, %s359
        $region52: #{tpu_custom_call.1} parent=31 // pred_fallthru
          _
      $region32: #{tpu_custom_call.1} parent=5 // pred_fallthru
        _
      %p377 = scmp.le.s32.totalorder 2, %s18
      // Predicated region
      $region53: #{tpu_custom_call.1} parent=5 // pred_check
        %p378 = pneg %p377
      $region54: #{tpu_custom_call.1} parent=5 // pred_check_branch
        %380 = sbr.rel (%p378) target = $region56
      $region55: #{tpu_custom_call.1} parent=5 // pred_region
        %s381 = ssub.s32 %s18, 2
        // Predicated region
        $region57: #{tpu_custom_call.1} parent=55 // pred_check
          %p382 = pneg %p145
        $region58: #{tpu_custom_call.1} parent=55 // pred_check_branch
          %384 = sbr.rel (%p382) target = $region60
        $region59: #{tpu_custom_call.1} parent=55 // pred_region
          %s385 = sand.u32 %s130, 1
          %s386 = scalar_lea.sflag [#allocation4], %s385
          %s387 = sand.u32 %s130, 1
          %s388 = smul.addr %s387, 8
          %s389 = scalar_lea.vmem [#allocation8], %s388
          %390 = dma.done %s386, 128
        $region60: #{tpu_custom_call.1} parent=55 // pred_fallthru
          _
      $region56: #{tpu_custom_call.1} parent=5 // pred_fallthru
        _
    $region6: #{tpu_custom_call.1} parent=1 // loop_footer
      %s22 = sadd.s32 1, %s18
    $region7: #{tpu_custom_call.1} parent=1 // loop_footer_branch
      %17 = sbr.rel target = $region3
    $region8: #{tpu_custom_call.1} parent=1 // loop_exit
      _
    %391 = vsyncpa [#allocation3], 1
    %s392 = scalar_lea.sflag [#allocation3], 1
    %393 = vsyncpa %s392, 1
    %394 = vsyncpa [#allocation6], 1
    %s395 = scalar_lea.sflag [#allocation6], 1
    %396 = vsyncpa %s395, 1
    %397 = vsyncpa [#allocation4], 1
    %s398 = scalar_lea.sflag [#allocation4], 1
    %399 = vsyncpa %s398, 1

</llo_original>
